<compile_context>
chip_gen: v6e
topology: v6e:2x2x1
jax: 0.10.0
libtpu: 0.0.40
codegen_flags: <defaults>
</compile_context>

<pallas_src>
import functools

import jax
import jax.numpy as jnp
from jax import lax
from jax.experimental import pallas as pl
from jax.experimental.pallas import tpu as pltpu


def _round_up(x: int, m: int) -> int:
    return (x + m - 1) // m * m


@functools.lru_cache(maxsize=None)
def _device_kind() -> str:
    try:
        return (jax.devices()[0].device_kind or "").lower()
    except Exception:
        return ""


@functools.lru_cache(maxsize=None)
def _vmem_capacity_bytes() -> int:
    """Per-generation VMEM capacity (v5e/v6e: 128 MiB, v7x: 64 MiB per TensorCore)."""
    try:
        cap = int(getattr(pltpu.get_tpu_info(), "vmem_capacity_bytes", 0) or 0)
        if cap > 0:
            return cap
    except Exception:
        pass
    return (64 << 20) if "v7" in _device_kind() else (128 << 20)


@functools.lru_cache(maxsize=None)
def _pipeline_mode_supported() -> bool:
    """One-time cached probe: does this build support BlockSpec(pipeline_mode=Buffered(k))
    on a TPU pallas_call (single-buffered resident operand + 3-deep streaming operand)?
    The probe is a tiny dedicated kernel, so real errors in the main kernel are never
    masked and the VMEM budget below stays consistent with the chosen buffering."""
    if not hasattr(pl, "Buffered"):
        return False

    def _probe(a_ref, b_ref, o_ref):
        o_ref[...] = a_ref[...] + b_ref[...]

    try:
        a = jnp.zeros((32, 128), jnp.float32)
        b = jnp.zeros((8, 128), jnp.float32)
        out = pl.pallas_call(
            _probe,
            out_shape=jax.ShapeDtypeStruct((32, 128), jnp.float32),
            grid=(4,),
            in_specs=[
                pl.BlockSpec((8, 128), lambda i: (i, 0), pipeline_mode=pl.Buffered(3)),
                pl.BlockSpec((8, 128), lambda i: (0, 0), pipeline_mode=pl.Buffered(1)),
            ],
            out_specs=pl.BlockSpec((8, 128), lambda i: (i, 0)),
        )(a, b)
        jax.block_until_ready(out)
        return True
    except Exception:
        return False


def _mlp_kernel(x_ref, w1_ref, b1_ref, w2_ref, b2_ref, o_ref, *, precision):
    # x: (TB, D) natural dtype ; w1: (D, Hp) ; b1: (1, Hp) ; w2: (Hp, D) ; b2: (1, D)
    x = x_ref[...].astype(w1_ref.dtype)        # in-kernel cast: no wrapper HBM round-trip
    # Layer 1: plain x @ W1^T (weights pre-transposed once in prepare_mynet_params).
    h = jnp.dot(x, w1_ref[...], preferred_element_type=jnp.float32, precision=precision)
    h = jax.nn.sigmoid(h + b1_ref[...])        # f32 bias add (VPU) + sigmoid (EUP)
    # Layer 2 (cast back to the matmul dtype; accumulate in f32).
    out = jnp.dot(h.astype(w2_ref.dtype), w2_ref[...],
                  preferred_element_type=jnp.float32, precision=precision)
    o_ref[...] = (out + b2_ref[...]).astype(o_ref.dtype)


def prepare_mynet_params(w1, b1, w2, b2, *, compute_dtype=jnp.bfloat16):
    """One-time layout plumbing, hoisted out of the forward path.

    PyTorch-layout params: w1 (H, D), b1 (H,)/(1,H), w2 (D, H), b2 (D,)/(1,D).
    Returns pre-transposed, hidden-dim-padded, dtype-cast tensors to be reused across
    every `mynet_forward` call (padded hidden units have bias 0 -> sigmoid 0.5, but their
    rows in W2^T are zero, so they contribute nothing to the output).
    """
    w1 = jnp.asarray(w1); b1 = jnp.asarray(b1)
    w2 = jnp.asarray(w2); b2 = jnp.asarray(b2)
    H, D = w1.shape
    assert w2.shape == (D, H), "w2 must have shape (input_dim, neuron_num)"
    compute_dtype = jnp.dtype(compute_dtype)
    H_pad = _round_up(H, 128)

    wc1 = jnp.zeros((D, H_pad), compute_dtype).at[:, :H].set(w1.T.astype(compute_dtype))
    wc2 = jnp.zeros((H_pad, D), compute_dtype).at[:H, :].set(w2.T.astype(compute_dtype))
    b1p = jnp.zeros((1, H_pad), jnp.float32).at[:, :H].set(
        b1.astype(jnp.float32).reshape(1, H))
    b2p = b2.astype(jnp.float32).reshape(1, D)
    return {"wc1": wc1, "wc2": wc2, "b1": b1p, "b2": b2p,
            "D": D, "H": H, "H_pad": H_pad, "compute_dtype": compute_dtype}


def mynet_forward(x, params, *, tile_b=None, precision=None, out_dtype=jnp.float32):
    """Forward of myNet(input_dim, layer_num=2, neuron_num): sigmoid MLP, f32 output."""
    wc1, wc2, b1p, b2p = params["wc1"], params["wc2"], params["b1"], params["b2"]
    compute_dtype = jnp.dtype(params["compute_dtype"])
    D, H_pad = params["D"], params["H_pad"]
    out_dtype = jnp.dtype(out_dtype)

    B, Dx = x.shape
    if Dx != D:
        raise ValueError(f"x feature dim {Dx} != prepared input_dim {D}")

    if precision is None:
        precision = lax.Precision.DEFAULT

    # ---- generation-aware batch tiling -------------------------------------
    kind = _device_kind()
    is_v7 = "v7" in kind
    is_v5e = ("v5e" in kind) or ("v5 lite" in kind) or ("v5lite" in kind)

    x_itemsize = jnp.dtype(x.dtype).itemsize
    c_itemsize = compute_dtype.itemsize
    # Sublane packing: 8 rows for 4-byte, 16 for 2-byte, 32 for 1-byte dtypes.
    sublane = max(8, 32 // max(1, min(x_itemsize, c_itemsize)))

    if tile_b is None:
        tile_b = 128 if is_v5e else 512        # v5e: match 128-row MXU; v6e/v7x: big tiles
    tile_b = max(sublane, _round_up(min(int(tile_b), _round_up(B, sublane)), sublane))
    # v7x: ensure >= 2 parallel batch tiles so both TensorCores get work.
    if is_v7:
        while pl.cdiv(B, tile_b) < 2 and tile_b >= 2 * sublane:
            tile_b = _round_up(tile_b // 2, sublane)
    num_steps = pl.cdiv(B, tile_b)             # ragged batch -> masked last tile
    grid = (num_steps,)

    # ---- buffering & VMEM budget --------------------------------------------
    has_pm = _pipeline_mode_supported()
    w_bufs = 1 if has_pm else 2                          # resident weights/biases
    x_bufs = 3 if (has_pm and num_steps >= 3) else 2     # deeper streaming pipeline

    weight_bytes = w_bufs * (2 * D * H_pad * c_itemsize + (H_pad + D) * 4)
    act_bytes = (x_bufs * tile_b * D * x_itemsize        # streaming x tiles
                 + 2 * tile_b * D * out_dtype.itemsize   # double-buffered output tiles
                 + tile_b * (D + H_pad) * c_itemsize     # in-kernel casts of x and h
                 + 2 * tile_b * max(H_pad, D) * 4)       # f32 matmul results / temps
    needed = weight_bytes + act_bytes

    cap = _vmem_capacity_bytes()
    usable = cap - (20 << 20) if cap >= (96 << 20) else cap   # ~108 MiB v5e/v6e, 64 MiB v7x
    if needed > usable:
        raise ValueError(
            f"Resident weights + activations need ~{needed >> 20} MiB VMEM but only "
            f"~{usable >> 20} MiB is usable on this chip; use bf16 compute_dtype or a "
            f"smaller tile_b (K-tiled fallback not implemented yet).")
    vmem_limit = int(min(usable, max(needed + (8 << 20), 16 << 20)))

    w_kwargs = {"pipeline_mode": pl.Buffered(1)} if has_pm else {}
    x_kwargs = {"pipeline_mode": pl.Buffered(x_bufs)} if (has_pm and x_bufs != 2) else {}

    in_specs = [
        pl.BlockSpec((tile_b, D), lambda i: (i, 0), **x_kwargs),     # streaming x tile
        pl.BlockSpec((D, H_pad), lambda i: (0, 0), **w_kwargs),      # W1^T resident
        pl.BlockSpec((1, H_pad), lambda i: (0, 0), **w_kwargs),      # b1
        pl.BlockSpec((H_pad, D), lambda i: (0, 0), **w_kwargs),      # W2^T resident
        pl.BlockSpec((1, D), lambda i: (0, 0), **w_kwargs),          # b2
    ]
    out_spec = pl.BlockSpec((tile_b, D), lambda i: (i, 0))

    kernel = functools.partial(_mlp_kernel, precision=precision)
    return pl.pallas_call(
        kernel,
        out_shape=jax.ShapeDtypeStruct((B, D), out_dtype),
        grid_spec=pltpu.PrefetchScalarGridSpec(
            num_scalar_prefetch=0,
            grid=grid,
            in_specs=in_specs,
            out_specs=out_spec,
        ),
        compiler_params=pltpu.CompilerParams(
            dimension_semantics=("parallel",),
            vmem_limit_bytes=vmem_limit,
        ),
    )(x, wc1, b1p, wc2, b2p)


def init_mynet_params(key, input_dim, neuron_num=-1):
    """Deterministic init mimicking nn.Linear defaults (uniform +/- 1/sqrt(fan_in))."""
    if neuron_num < 0:
        neuron_num = input_dim
    k1, k2, k3, k4 = jax.random.split(key, 4)
    bound1 = 1.0 / jnp.sqrt(input_dim)
    bound2 = 1.0 / jnp.sqrt(neuron_num)
    w1 = jax.random.uniform(k1, (neuron_num, input_dim), jnp.float32, -bound1, bound1)
    b1 = jax.random.uniform(k2, (1, neuron_num), jnp.float32, -bound1, bound1)
    w2 = jax.random.uniform(k3, (input_dim, neuron_num), jnp.float32, -bound2, bound2)
    b2 = jax.random.uniform(k4, (1, input_dim), jnp.float32, -bound2, bound2)
    return w1, b1, w2, b2


if __name__ == "__main__":
    key = jax.random.PRNGKey(0)
    k_x, k_p = jax.random.split(key)

    batch, input_dim = 64, 32
    x = jax.random.normal(k_x, (batch, input_dim), jnp.float32)
    w1, b1, w2, b2 = init_mynet_params(k_p, input_dim)

    hp = lax.Precision.HIGHEST
    ref = (jnp.dot(jax.nn.sigmoid(jnp.dot(x, w1.T, precision=hp) + b1),
                   w2.T, precision=hp) + b2)

    # Default path: bf16 matmul inputs, f32 accumulate / bias / sigmoid.
    # tile_b=16 (bf16 sublane pack) -> grid=(4,), exercises the pipelined batch tiles.
    params_bf16 = prepare_mynet_params(w1, b1, w2, b2)              # bf16 by default
    out = jax.block_until_ready(mynet_forward(x, params_bf16, tile_b=16))
    assert out.shape == (batch, input_dim) and out.dtype == jnp.float32
    assert jnp.allclose(out, ref, atol=5e-2, rtol=5e-2)

    # Bit-parity mode: f32 weights + Precision.HIGHEST matmuls.
    params_f32 = prepare_mynet_params(w1, b1, w2, b2, compute_dtype=jnp.float32)
    out_f32 = jax.block_until_ready(
        mynet_forward(x, params_f32, tile_b=8, precision=hp))
    assert jnp.allclose(out_f32, ref, atol=1e-5, rtol=1e-5)

    # Ragged batch (B not a multiple of tile_b): masked last tile, no padding copies.
    out_ragged = jax.block_until_ready(
        mynet_forward(x[:50], params_f32, tile_b=16, precision=hp))
    assert out_ragged.shape == (50, input_dim)
    assert jnp.allclose(out_ragged, ref[:50], atol=1e-5, rtol=1e-5)

    print("KERNEL_OK")
</pallas_src>

<mosaic_0001>
module attributes {stable_mosaic.version = 11 : i64} {
  func.func @_mlp_kernel(%arg0: i32, %arg1: memref<16x32xf32, #tpu.memory_space<vmem>>, %arg2: memref<32x128xbf16, #tpu.memory_space<vmem>>, %arg3: memref<1x128xf32, #tpu.memory_space<vmem>>, %arg4: memref<128x32xbf16, #tpu.memory_space<vmem>>, %arg5: memref<1x32xf32, #tpu.memory_space<vmem>>, %arg6: memref<16x32xf32, #tpu.memory_space<vmem>>) attributes {dimension_semantics = [#tpu.dimension_semantics<parallel>], iteration_bounds = array<i64: 4>, scalar_prefetch = 0 : i64, scratch_operands = 0 : i64, tpu.core_type = #tpu.core_type<tc>, window_params = [{transform_indices = @transform_0, window_bounds = array<i64: 16, 32>}, {pipeline_mode = #tpu.pipeline_mode<synchronous>, transform_indices = @transform_1, window_bounds = array<i64: 32, 128>}, {pipeline_mode = #tpu.pipeline_mode<synchronous>, transform_indices = @transform_2, window_bounds = array<i64: 1, 128>}, {pipeline_mode = #tpu.pipeline_mode<synchronous>, transform_indices = @transform_3, window_bounds = array<i64: 128, 32>}, {pipeline_mode = #tpu.pipeline_mode<synchronous>, transform_indices = @transform_4, window_bounds = array<i64: 1, 32>}, {transform_indices = @transform_5, window_bounds = array<i64: 16, 32>}]} {
    %c0 = arith.constant 0 : index
    %c0_0 = arith.constant 0 : index
    %0 = vector.load %arg1[%c0, %c0_0] : memref<16x32xf32, #tpu.memory_space<vmem>>, vector<16x32xf32>
    %1 = arith.truncf %0 : vector<16x32xf32> to vector<16x32xbf16>
    %c0_1 = arith.constant 0 : index
    %c0_2 = arith.constant 0 : index
    %2 = vector.load %arg2[%c0_1, %c0_2] : memref<32x128xbf16, #tpu.memory_space<vmem>>, vector<32x128xbf16>
    %cst = arith.constant dense<0.000000e+00> : vector<16x128xf32>
    %3 = tpu.matmul %1, %2, %cst {dimension_numbers = #tpu.dot_dimension_numbers<[1], [0], [0], [1], [0, 0, 1, 1], [], []>} : vector<16x32xbf16>, vector<32x128xbf16>, vector<16x128xf32> -> vector<16x128xf32>
    %c0_3 = arith.constant 0 : index
    %c0_4 = arith.constant 0 : index
    %4 = vector.load %arg3[%c0_3, %c0_4] : memref<1x128xf32, #tpu.memory_space<vmem>>, vector<1x128xf32>
    %5 = vector.broadcast %4 : vector<1x128xf32> to vector<16x128xf32>
    %6 = arith.addf %3, %5 : vector<16x128xf32>
    %7 = arith.negf %6 : vector<16x128xf32>
    %8 = math.exp %7 : vector<16x128xf32>
    %cst_5 = arith.constant 1.000000e+00 : f32
    %9 = vector.broadcast %cst_5 : f32 to vector<16x128xf32>
    %10 = arith.addf %9, %8 : vector<16x128xf32>
    %11 = arith.divf %9, %10 : vector<16x128xf32>
    %12 = arith.truncf %11 : vector<16x128xf32> to vector<16x128xbf16>
    %c0_6 = arith.constant 0 : index
    %c0_7 = arith.constant 0 : index
    %13 = vector.load %arg4[%c0_6, %c0_7] : memref<128x32xbf16, #tpu.memory_space<vmem>>, vector<128x32xbf16>
    %cst_8 = arith.constant dense<0.000000e+00> : vector<16x32xf32>
    %14 = tpu.matmul %12, %13, %cst_8 {dimension_numbers = #tpu.dot_dimension_numbers<[1], [0], [0], [1], [0, 0, 1, 1], [], []>} : vector<16x128xbf16>, vector<128x32xbf16>, vector<16x32xf32> -> vector<16x32xf32>
    %c0_9 = arith.constant 0 : index
    %c0_10 = arith.constant 0 : index
    %15 = vector.load %arg5[%c0_9, %c0_10] : memref<1x32xf32, #tpu.memory_space<vmem>>, vector<1x32xf32>
    %16 = vector.broadcast %15 : vector<1x32xf32> to vector<16x32xf32>
    %17 = arith.addf %14, %16 : vector<16x32xf32>
    %c0_11 = arith.constant 0 : index
    %c0_12 = arith.constant 0 : index
    %18 = vector.load %arg6[%c0_11, %c0_12] : memref<16x32xf32, #tpu.memory_space<vmem>>, vector<16x32xf32>
    tpu.vector_store %arg6[%c0_11, %c0_12], %17 {strides = array<i32>} : memref<16x32xf32, #tpu.memory_space<vmem>>, vector<16x32xf32>,
    return
  }
  func.func @transform_0(%arg0: i32) -> (i32, i32) {
    %c0_i32 = arith.constant 0 : i32
    %c0_i32_0 = arith.constant 0 : i32
    return %arg0, %c0_i32 : i32, i32
  }
  func.func @transform_1(%arg0: i32) -> (i32, i32) {
    %c0_i32 = arith.constant 0 : i32
    %c0_i32_0 = arith.constant 0 : i32
    %c0_i32_1 = arith.constant 0 : i32
    return %c0_i32, %c0_i32_0 : i32, i32
  }
  func.func @transform_2(%arg0: i32) -> (i32, i32) {
    %c0_i32 = arith.constant 0 : i32
    %c0_i32_0 = arith.constant 0 : i32
    %c0_i32_1 = arith.constant 0 : i32
    return %c0_i32, %c0_i32_0 : i32, i32
  }
  func.func @transform_3(%arg0: i32) -> (i32, i32) {
    %c0_i32 = arith.constant 0 : i32
    %c0_i32_0 = arith.constant 0 : i32
    %c0_i32_1 = arith.constant 0 : i32
    return %c0_i32, %c0_i32_0 : i32, i32
  }
  func.func @transform_4(%arg0: i32) -> (i32, i32) {
    %c0_i32 = arith.constant 0 : i32
    %c0_i32_0 = arith.constant 0 : i32
    %c0_i32_1 = arith.constant 0 : i32
    return %c0_i32, %c0_i32_0 : i32, i32
  }
  func.func @transform_5(%arg0: i32) -> (i32, i32) {
    %c0_i32 = arith.constant 0 : i32
    %c0_i32_0 = arith.constant 0 : i32
    return %arg0, %c0_i32 : i32, i32
  }
}

</mosaic_0001>

<llo_original>
// kernel: tpu_custom_call.1
$region0: #{tpu_custom_call.1}
  #allocation0 [shape = 'u32[]', space=smem, size = 0x4, offset = 0x4, fixed_abs, tag = 'smem constant byte address 0x4 - core index']
  #allocation1 [shape = 'u32[144,128]{1,0:T(1,128)}', space=vmem, size = 0x12000, scoped, tag = 'internal scratch']
  %s0 = inlined_call_operand.vmem [shape: f32[64,32], index: 0, kind: input, shape index: {}]
  %s1 = inlined_call_operand.vmem [shape: bf16[32,128], index: 1, kind: input, shape index: {}]
  %s2 = inlined_call_operand.vmem [shape: f32[1,128], index: 2, kind: input, shape index: {}]
  %s3 = inlined_call_operand.vmem [shape: bf16[128,32], index: 3, kind: input, shape index: {}]
  %s4 = inlined_call_operand.vmem [shape: f32[1,32], index: 4, kind: input, shape index: {}]
  %s5 = inlined_call_operand.vmem [shape: f32[64,32], index: 5, kind: output, shape index: {}]
  %s6 = sld [smem:[#allocation0]]
  $region53: #{tpu_custom_call.1} parent=0
    _
  %s8 = ssub.s32 1, %s6
  %s9 = scalar_select 0, %s8, %s6
  loop: start=0, step=1, limit=6
  $region2: #{tpu_custom_call.1} parent=0 // loop_pre_header
    _
  $region3: #{tpu_custom_call.1} parent=0 // loop_header
    %s11 = sphi 0, %s15
    %p12 = scmp.ge.s32.totalorder %s11, 6
    %s21 = sphi 0, %s23
    %s24 = sphi 0, %s21
    %s25 = sphi 0, %s24
    %s41 = sphi 0, %s25
    %s45 = sphi 0, %s45
    %s47 = sphi 0, %s45
    %s48 = sphi 0, %s47
    %s62 = sphi 0, %s48
    %s66 = sphi 0, %s66
    %s68 = sphi 0, %s66
    %s69 = sphi 0, %s68
    %s83 = sphi 0, %s69
    %s87 = sphi 0, %s87
    %s89 = sphi 0, %s87
    %s90 = sphi 0, %s89
    %s104 = sphi 0, %s90
    %s108 = sphi 0, %s108
    %s110 = sphi 0, %s108
    %s111 = sphi 0, %s110
    %s125 = sphi 0, %s111
    %s131 = sphi 0, %s133
    %s134 = sphi 0, %s131
    %s135 = sphi 0, %s134
    %s151 = sphi 0, %s135
  $region4: #{tpu_custom_call.1} parent=0 // loop_header_branch
    %14 = sbr.rel (%p12) target = $region8
  $region5: #{tpu_custom_call.1} parent=0 // loop_body
    %s16 = ssub.s32 %s11, 1
    %s17 = ssub.s32 %s11, 2
    %s18 = sadd.s32 %s11, 1
    %s19 = ssub.s32 %s11, %s18
    %p20 = scmp.eq.s32.totalorder %s19, 0
    %s22 = sadd.s32 %s21, 1
    %s23 = scalar_select %p20, %s21, %s22
    %p26 = pneg %p20
    %p27 = scmp.eq.s32.totalorder %s11, 3
    %p28 = por %p26, %p27
    %p29 = scmp.ne.s32.totalorder %s21, %s24
    %p30 = scmp.eq.s32.totalorder %s11, 0
    %p31 = por %p29, %p30
    %p32 = scmp.ne.s32.totalorder %s21, %s24
    %p33 = scmp.eq.s32.totalorder %s16, 3
    %p34 = por %p32, %p33
    %p35 = scmp.ne.s32.totalorder %s24, %s25
    %p36 = scmp.eq.s32.totalorder %s16, 0
    %p37 = por %p35, %p36
    %p38 = scmp.ne.s32.totalorder %s24, %s25
    %p39 = scmp.eq.s32.totalorder %s17, 3
    %p40 = por %p38, %p39
    %p42 = scmp.ne.s32.totalorder %s25, %s41
    %p43 = scmp.eq.s32.totalorder %s17, 0
    %p44 = por %p42, %p43
    %s46 = sadd.s32 %s45, 1
    %p49 = scmp.eq.s32.totalorder %s11, 3
    %p50 = scmp.ne.s32.totalorder %s45, %s47
    %p51 = scmp.eq.s32.totalorder %s11, 0
    %p52 = por %p50, %p51
    %p53 = scmp.ne.s32.totalorder %s45, %s47
    %p54 = scmp.eq.s32.totalorder %s16, 3
    %p55 = por %p53, %p54
    %p56 = scmp.ne.s32.totalorder %s47, %s48
    %p57 = scmp.eq.s32.totalorder %s16, 0
    %p58 = por %p56, %p57
    %p59 = scmp.ne.s32.totalorder %s47, %s48
    %p60 = scmp.eq.s32.totalorder %s17, 3
    %p61 = por %p59, %p60
    %p63 = scmp.ne.s32.totalorder %s48, %s62
    %p64 = scmp.eq.s32.totalorder %s17, 0
    %p65 = por %p63, %p64
    %s67 = sadd.s32 %s66, 1
    %p70 = scmp.eq.s32.totalorder %s11, 3
    %p71 = scmp.ne.s32.totalorder %s66, %s68
    %p72 = scmp.eq.s32.totalorder %s11, 0
    %p73 = por %p71, %p72
    %p74 = scmp.ne.s32.totalorder %s66, %s68
    %p75 = scmp.eq.s32.totalorder %s16, 3
    %p76 = por %p74, %p75
    %p77 = scmp.ne.s32.totalorder %s68, %s69
    %p78 = scmp.eq.s32.totalorder %s16, 0
    %p79 = por %p77, %p78
    %p80 = scmp.ne.s32.totalorder %s68, %s69
    %p81 = scmp.eq.s32.totalorder %s17, 3
    %p82 = por %p80, %p81
    %p84 = scmp.ne.s32.totalorder %s69, %s83
    %p85 = scmp.eq.s32.totalorder %s17, 0
    %p86 = por %p84, %p85
    %s88 = sadd.s32 %s87, 1
    %p91 = scmp.eq.s32.totalorder %s11, 3
    %p92 = scmp.ne.s32.totalorder %s87, %s89
    %p93 = scmp.eq.s32.totalorder %s11, 0
    %p94 = por %p92, %p93
    %p95 = scmp.ne.s32.totalorder %s87, %s89
    %p96 = scmp.eq.s32.totalorder %s16, 3
    %p97 = por %p95, %p96
    %p98 = scmp.ne.s32.totalorder %s89, %s90
    %p99 = scmp.eq.s32.totalorder %s16, 0
    %p100 = por %p98, %p99
    %p101 = scmp.ne.s32.totalorder %s89, %s90
    %p102 = scmp.eq.s32.totalorder %s17, 3
    %p103 = por %p101, %p102
    %p105 = scmp.ne.s32.totalorder %s90, %s104
    %p106 = scmp.eq.s32.totalorder %s17, 0
    %p107 = por %p105, %p106
    %s109 = sadd.s32 %s108, 1
    %p112 = scmp.eq.s32.totalorder %s11, 3
    %p113 = scmp.ne.s32.totalorder %s108, %s110
    %p114 = scmp.eq.s32.totalorder %s11, 0
    %p115 = por %p113, %p114
    %p116 = scmp.ne.s32.totalorder %s108, %s110
    %p117 = scmp.eq.s32.totalorder %s16, 3
    %p118 = por %p116, %p117
    %p119 = scmp.ne.s32.totalorder %s110, %s111
    %p120 = scmp.eq.s32.totalorder %s16, 0
    %p121 = por %p119, %p120
    %p122 = scmp.ne.s32.totalorder %s110, %s111
    %p123 = scmp.eq.s32.totalorder %s17, 3
    %p124 = por %p122, %p123
    %p126 = scmp.ne.s32.totalorder %s111, %s125
    %p127 = scmp.eq.s32.totalorder %s17, 0
    %p128 = por %p126, %p127
    %s129 = ssub.s32 %s11, %s18
    %p130 = scmp.eq.s32.totalorder %s129, 0
    %s132 = sadd.s32 %s131, 1
    %s133 = scalar_select %p130, %s131, %s132
    %p136 = pneg %p130
    %p137 = scmp.eq.s32.totalorder %s11, 3
    %p138 = por %p136, %p137
    %p139 = scmp.ne.s32.totalorder %s131, %s134
    %p140 = scmp.eq.s32.totalorder %s11, 0
    %p141 = por %p139, %p140
    %p142 = scmp.ne.s32.totalorder %s131, %s134
    %p143 = scmp.eq.s32.totalorder %s16, 3
    %p144 = por %p142, %p143
    %p145 = scmp.ne.s32.totalorder %s134, %s135
    %p146 = scmp.eq.s32.totalorder %s16, 0
    %p147 = por %p145, %p146
    %p148 = scmp.ne.s32.totalorder %s134, %s135
    %p149 = scmp.eq.s32.totalorder %s17, 3
    %p150 = por %p148, %p149
    %p152 = scmp.ne.s32.totalorder %s135, %s151
    %p153 = scmp.eq.s32.totalorder %s17, 0
    %p154 = por %p152, %p153
    %p155 = scmp.le.s32.totalorder 1, %s11
    %p156 = scmp.lt.s32.totalorder %s11, 5
    %p157 = pnand %p155, %p156
    %p158 = pneg %p157
    // Predicated region
    $region9: #{tpu_custom_call.1} parent=5 // pred_check
      _
    $region10: #{tpu_custom_call.1} parent=5 // pred_check_branch
      %160 = sbr.rel (%p157) target = $region12
    $region11: #{tpu_custom_call.1} parent=5 // pred_region
      %s161 = ssub.s32 %s11, 1
      // Predicated region
      $region13: #{tpu_custom_call.1} parent=11 // pred_check
        %p162 = pneg %p58
      $region14: #{tpu_custom_call.1} parent=11 // pred_check_branch
        %164 = sbr.rel (%p162) target = $region16
      $region15: #{tpu_custom_call.1} parent=11 // pred_region
        _
      $region16: #{tpu_custom_call.1} parent=11 // pred_fallthru
        _
      // Predicated region
      $region17: #{tpu_custom_call.1} parent=11 // pred_check
        %p165 = pneg %p79
      $region18: #{tpu_custom_call.1} parent=11 // pred_check_branch
        %167 = sbr.rel (%p165) target = $region20
      $region19: #{tpu_custom_call.1} parent=11 // pred_region
        _
      $region20: #{tpu_custom_call.1} parent=11 // pred_fallthru
        _
      // Predicated region
      $region21: #{tpu_custom_call.1} parent=11 // pred_check
        %p168 = pneg %p100
      $region22: #{tpu_custom_call.1} parent=11 // pred_check_branch
        %170 = sbr.rel (%p168) target = $region24
      $region23: #{tpu_custom_call.1} parent=11 // pred_region
        _
      $region24: #{tpu_custom_call.1} parent=11 // pred_fallthru
        _
      // Predicated region
      $region25: #{tpu_custom_call.1} parent=11 // pred_check
        %p171 = pneg %p121
      $region26: #{tpu_custom_call.1} parent=11 // pred_check_branch
        %173 = sbr.rel (%p171) target = $region28
      $region27: #{tpu_custom_call.1} parent=11 // pred_region
        _
      $region28: #{tpu_custom_call.1} parent=11 // pred_fallthru
        _
    $region12: #{tpu_custom_call.1} parent=5 // pred_fallthru
      _
    %p174 = scmp.lt.s32.totalorder %s11, 4
    // Predicated region
    $region29: #{tpu_custom_call.1} parent=5 // pred_check
      %p175 = pneg %p174
    $region30: #{tpu_custom_call.1} parent=5 // pred_check_branch
      %177 = sbr.rel (%p175) target = $region32
    $region31: #{tpu_custom_call.1} parent=5 // pred_region
      // Predicated region
      $region33: #{tpu_custom_call.1} parent=31 // pred_check
        %p178 = pneg %p31
      $region34: #{tpu_custom_call.1} parent=31 // pred_check_branch
        %180 = sbr.rel (%p178) target = $region36
      $region35: #{tpu_custom_call.1} parent=31 // pred_region
        %s181 = smul.u32 2, %s11
        %p182 = scmp.lt.s32.totalorder %s181, 7
        %s183 = scalar_select %p182, %s181, 7
        %s184 = smul.addr %s183, 8
        %s185 = scalar_lea.vmem %s0, %s184
        %s186 = smul.u32 2, %s11
      $region36: #{tpu_custom_call.1} parent=31 // pred_fallthru
        _
    $region32: #{tpu_custom_call.1} parent=5 // pred_fallthru
      _
    %p187 = scmp.le.s32.totalorder 1, %s11
    %p188 = scmp.lt.s32.totalorder %s11, 5
    %p189 = pnand %p187, %p188
    %p190 = pneg %p189
    // Predicated region
    $region37: #{tpu_custom_call.1} parent=5 // pred_check
      _
    $region38: #{tpu_custom_call.1} parent=5 // pred_check_branch
      %192 = sbr.rel (%p189) target = $region40
    $region39: #{tpu_custom_call.1} parent=5 // pred_region
      %s193 = ssub.s32 %s11, 1
      %s194 = smul.u32 2, %s16
      %p195 = scmp.lt.s32.totalorder %s194, 7
      %s196 = scalar_select %p195, %s194, 7
      %s197 = smul.addr %s196, 8
      %s198 = scalar_lea.vmem %s0, %s197
      %p199 = pneg %p37
      %p200 = pneg %p34
      %p201 = pneg %p58
      %p202 = pneg %p55
      %p203 = pneg %p79
      %p204 = pneg %p76
      %p205 = pneg %p100
      %p206 = pneg %p97
      %p207 = pneg %p121
      %p208 = pneg %p118
      %p209 = pneg %p147
      %p210 = pneg %p144
      %s211 = smul.u32 2, %s16
      %p212 = scmp.lt.s32.totalorder %s211, 7
      %s213 = scalar_select %p212, %s211, 7
      %s214 = smul.addr %s213, 8
      %s215 = scalar_lea.vmem %s5, %s214
      %s216 = smul.u32 2, %s16
      %p217 = scmp.lt.s32.totalorder %s216, 7
      %s218 = scalar_select %p217, %s216, 7
      %s219 = smul.addr %s218, 8
      %s220 = scalar_lea.vmem %s0, %s219
      %s221 = smul.u32 2, %s16
      %s222 = smul.u32 2, %s16
      %p223 = scmp.lt.s32.totalorder %s222, 7
      %s224 = scalar_select %p223, %s222, 7
      %s225 = smul.addr %s224, 8
      %s226 = scalar_lea.vmem %s5, %s225
      %s227 = smul.u32 2, %s16
      %v229 = vld [vmem:[%s220] sm:$0xff]
      %v230 = vld [vmem:[%s220 + $0x8] sm:$0xff]
      %v231 = vpack.c.bf16 %v230, %v229
      %v232 = vld [vmem:[%s1] sm:$0xf]
      %v233 = vld [vmem:[%s1 + $0x4] sm:$0xf]
      %v234 = vld [vmem:[%s1 + $0x8] sm:$0xf]
      %v235 = vld [vmem:[%s1 + $0xc] sm:$0xf]
      %v236 = vld [vmem:[%s2] sm:$0x1]
      %v238 = vlaneseq
      %v239 = vshrl.u32 %v238, 7
      %v240 = vsub.s32 0, %v239
      %v241 = vrot.slane %v236, %v240
      %v247 = vunpack.c.l.b16 %v232
      %v248 = vunpack.c.l.b16 %v233
      %v249 = vunpack.c.l.b16 %v234
      %v250 = vunpack.c.l.b16 %v235
      %v251 = vpack.c.b16 %v248, %v247
      %v252 = vpack.c.b16 %v250, %v249
      %vm255 = vcmask 261120
      %v257 = vsel %vm255, %v231, 0
      %259 = vmatprep.subr.bf16.mxu0 0
      %260 = vmatpush1.bf16.msra.mxu0 0
      %261 = vmatprep.subr.bf16.mxu0 0
      %262 = vmatpush1.bf16.msra.mxu0 0
      %263 = vmatprep.subr.bf16.mxu0 0
      %264 = vmatpush1.bf16.msra.mxu0 0
      %265 = vmatprep.subr.bf16.mxu0 0
      %266 = vmatpush1.bf16.msra.mxu0 0
      %267 = vmatprep.subr.bf16.mxu0 0
      %268 = vmatpush1.bf16.msra.mxu0 0
      %269 = vmatprep.subr.bf16.mxu0 0
      %270 = vmatpush1.bf16.msra.mxu0 0
      %271 = vmatprep.subr.bf16.mxu0 0
      %272 = vmatpush1.bf16.msra.mxu0 %v252
      %273 = vmatprep.subr.bf16.mxu0 0
      %274 = vmatpush1.bf16.msra.mxu0 %v251
      %275 = vmatprep.subr.bf16.mxu0 0
      %276 = vmatpush2.bf16.msra.mxu0 0
      %277 = vmatprep.subr.bf16.mxu0 0
      %278 = vmatpush2.bf16.msra.mxu0 0
      %279 = vmatprep.subr.bf16.mxu0 0
      %280 = vmatpush2.bf16.msra.mxu0 0
      %281 = vmatprep.subr.bf16.mxu0 0
      %282 = vmatpush2.bf16.msra.mxu0 0
      %283 = vmatprep.subr.bf16.mxu0 0
      %284 = vmatpush2.bf16.msra.mxu0 0
      %285 = vmatprep.subr.bf16.mxu0 0
      %286 = vmatpush2.bf16.msra.mxu0 0
      %287 = vmatprep.subr.bf16.mxu0 0
      %288 = vmatpush2.bf16.msra.mxu0 0
      %289 = vmatprep.subr.bf16.mxu0 0
      %290 = vmatpush2.bf16.msra.mxu0 0
      %291 = vmatprep.mubr.bf16.mxu0 0
      %292 = vmatmul.mubr.bf16.gmra.mxu0 %v257
      %v293 = vpop.f32.mrf.mxu0
      %v294 = vadd.f32 %v241, %v293
      %v295 = vpop.f32.mrf.mxu0
      %v296 = vpop.f32.mrf.mxu0
      %v297 = vadd.f32 %v241, %v296
      %v298 = vpop.f32.mrf.mxu0
      %299 = vdwg.mxu0
      %v300 = vxor.u32 %v294, 2147483648
      %v301 = vxor.u32 %v297, 2147483648
      %v302 = vmul.f32 %v300, 1.442695
      %v303 = vpow.pop %v302
      %v304 = vmul.f32 %v301, 1.442695
      %v305 = vpow.pop %v304
      %v306 = vadd.f32 %v303, 1.0
      %v307 = vadd.f32 %v305, 1.0
      %v308 = vrcp.pop %v306
      %v309 = vmul.f32 1.0, %v308
      %v310 = vrcp.pop %v307
      %v311 = vmul.f32 1.0, %v310
      %v312 = vpack.c.bf16 %v311, %v309
      %v313 = vld [vmem:[%s3] sm:$0xf]
      %v314 = vld [vmem:[%s3 + $0x4] sm:$0xf]
      %v315 = vld [vmem:[%s3 + $0x8] sm:$0xf]
      %v316 = vld [vmem:[%s3 + $0xc] sm:$0xf]
      %v317 = vld [vmem:[%s3 + $0x10] sm:$0xf]
      %v318 = vld [vmem:[%s3 + $0x14] sm:$0xf]
      %v319 = vld [vmem:[%s3 + $0x18] sm:$0xf]
      %v320 = vld [vmem:[%s3 + $0x1c] sm:$0xf]
      %v321 = vld [vmem:[%s3 + $0x20] sm:$0xf]
      %v322 = vld [vmem:[%s3 + $0x24] sm:$0xf]
      %v323 = vld [vmem:[%s3 + $0x28] sm:$0xf]
      %v324 = vld [vmem:[%s3 + $0x2c] sm:$0xf]
      %v325 = vld [vmem:[%s3 + $0x30] sm:$0xf]
      %v326 = vld [vmem:[%s3 + $0x34] sm:$0xf]
      %v327 = vld [vmem:[%s3 + $0x38] sm:$0xf]
      %v328 = vld [vmem:[%s3 + $0x3c] sm:$0xf]
      %v329 = vld [vmem:[%s4] sm:$0x1]
      %v331 = vlaneseq
      %v332 = vshrl.u32 %v331, 7
      %v333 = vsub.s32 0, %v332
      %v334 = vrot.slane %v329, %v333
      %v352 = vunpack.c.l.b16 %v313
      %v353 = vunpack.c.l.b16 %v314
      %v354 = vunpack.c.l.b16 %v315
      %v355 = vunpack.c.l.b16 %v316
      %v356 = vunpack.c.l.b16 %v317
      %v357 = vunpack.c.l.b16 %v318
      %v358 = vunpack.c.l.b16 %v319
      %v359 = vunpack.c.l.b16 %v320
      %v360 = vunpack.c.l.b16 %v321
      %v361 = vunpack.c.l.b16 %v322
      %v362 = vunpack.c.l.b16 %v323
      %v363 = vunpack.c.l.b16 %v324
      %v364 = vunpack.c.l.b16 %v325
      %v365 = vunpack.c.l.b16 %v326
      %v366 = vunpack.c.l.b16 %v327
      %v367 = vunpack.c.l.b16 %v328
      %v368 = vpack.c.b16 %v353, %v352
      %v369 = vpack.c.b16 %v355, %v354
      %v370 = vpack.c.b16 %v357, %v356
      %v371 = vpack.c.b16 %v359, %v358
      %v372 = vpack.c.b16 %v361, %v360
      %v373 = vpack.c.b16 %v363, %v362
      %v374 = vpack.c.b16 %v365, %v364
      %v375 = vpack.c.b16 %v367, %v366
      %384 = vmatprep.subr.bf16.mxu0 0
      %385 = vmatpush1.bf16.msra.mxu0 %v375
      %386 = vmatprep.subr.bf16.mxu0 0
      %387 = vmatpush1.bf16.msra.mxu0 %v374
      %388 = vmatprep.subr.bf16.mxu0 0
      %389 = vmatpush1.bf16.msra.mxu0 %v373
      %390 = vmatprep.subr.bf16.mxu0 0
      %391 = vmatpush1.bf16.msra.mxu0 %v372
      %392 = vmatprep.subr.bf16.mxu0 0
      %393 = vmatpush1.bf16.msra.mxu0 %v371
      %394 = vmatprep.subr.bf16.mxu0 0
      %395 = vmatpush1.bf16.msra.mxu0 %v370
      %396 = vmatprep.subr.bf16.mxu0 0
      %397 = vmatpush1.bf16.msra.mxu0 %v369
      %398 = vmatprep.subr.bf16.mxu0 0
      %399 = vmatpush1.bf16.msra.mxu0 %v368
      %400 = vmatprep.subr.bf16.mxu0 0
      %401 = vmatpush2.bf16.msra.mxu0 0
      %402 = vmatprep.subr.bf16.mxu0 0
      %403 = vmatpush2.bf16.msra.mxu0 0
      %404 = vmatprep.subr.bf16.mxu0 0
      %405 = vmatpush2.bf16.msra.mxu0 0
      %406 = vmatprep.subr.bf16.mxu0 0
      %407 = vmatpush2.bf16.msra.mxu0 0
      %408 = vmatprep.subr.bf16.mxu0 0
      %409 = vmatpush2.bf16.msra.mxu0 0
      %410 = vmatprep.subr.bf16.mxu0 0
      %411 = vmatpush2.bf16.msra.mxu0 0
      %412 = vmatprep.subr.bf16.mxu0 0
      %413 = vmatpush2.bf16.msra.mxu0 0
      %414 = vmatprep.subr.bf16.mxu0 0
      %415 = vmatpush2.bf16.msra.mxu0 0
      %416 = vmatprep.mubr.bf16.mxu0 0
      %417 = vmatmul.mubr.bf16.gmra.mxu0 %v312
      %v418 = vpop.f32.mrf.mxu0
      %v419 = vadd.f32 %v334, %v418
      %v420 = vpop.f32.mrf.mxu0
      %v421 = vpop.f32.mrf.mxu0
      %v422 = vadd.f32 %v334, %v421
      %v423 = vpop.f32.mrf.mxu0
      %424 = vdwg.mxu0
      %425 = vst.msk [vmem:[%s226] sm:$0xff] %vm255, %v419
      %426 = vst.msk [vmem:[%s226 + $0x8] sm:$0xff] %vm255, %v422
      %s427 = smul.u32 2, %s16
      %p428 = scmp.lt.s32.totalorder %s427, 7
      %s429 = scalar_select %p428, %s427, 7
      %s430 = smul.addr %s429, 8
      %s431 = scalar_lea.vmem %s5, %s430
      // Predicated region
      $region41: #{tpu_custom_call.1} parent=39 // pred_check
        %p432 = pneg %p144
      $region42: #{tpu_custom_call.1} parent=39 // pred_check_branch
        %434 = sbr.rel (%p432) target = $region44
      $region43: #{tpu_custom_call.1} parent=39 // pred_region
        %s435 = smul.u32 2, %s16
      $region44: #{tpu_custom_call.1} parent=39 // pred_fallthru
        _
    $region40: #{tpu_custom_call.1} parent=5 // pred_fallthru
      _
    %p436 = scmp.le.s32.totalorder 2, %s11
    // Predicated region
    $region45: #{tpu_custom_call.1} parent=5 // pred_check
      %p437 = pneg %p436
    $region46: #{tpu_custom_call.1} parent=5 // pred_check_branch
      %439 = sbr.rel (%p437) target = $region48
    $region47: #{tpu_custom_call.1} parent=5 // pred_region
      %s440 = ssub.s32 %s11, 2
      // Predicated region
      $region49: #{tpu_custom_call.1} parent=47 // pred_check
        %p441 = pneg %p150
      $region50: #{tpu_custom_call.1} parent=47 // pred_check_branch
        %443 = sbr.rel (%p441) target = $region52
      $region51: #{tpu_custom_call.1} parent=47 // pred_region
        %s444 = smul.u32 2, %s17
        %p445 = scmp.lt.s32.totalorder %s444, 7
        %s446 = scalar_select %p445, %s444, 7
        %s447 = smul.addr %s446, 8
        %s448 = scalar_lea.vmem %s5, %s447
      $region52: #{tpu_custom_call.1} parent=47 // pred_fallthru
        _
    $region48: #{tpu_custom_call.1} parent=5 // pred_fallthru
      _
  $region6: #{tpu_custom_call.1} parent=0 // loop_footer
    %s15 = sadd.s32 1, %s11
  $region7: #{tpu_custom_call.1} parent=0 // loop_footer_branch
    %10 = sbr.rel target = $region3
  $region8: #{tpu_custom_call.1} parent=0 // loop_exit
    _

</llo_original>
